<compile_context>
chip_gen: v7x
topology: tpu7x:2x2x1
jax: 0.10.0
libtpu: 0.0.40
codegen_flags: <defaults>
</compile_context>

<pallas_src>
import functools
import math

import jax
import jax.numpy as jnp
from jax.experimental import pallas as pl
from jax.experimental.pallas import tpu as pltpu


# ---------------------------------------------------------------------------
# Kernels
# ---------------------------------------------------------------------------
def _fused_se_kernel(x_ref, w1t_ref, b1_ref, w2t_ref, b2_ref, o_ref, *, inv_t):
    """Pool + gate + rescale for one batch; x slab resident in VMEM."""
    x = x_ref[...]                                              # (1, C, T)
    m = jnp.sum(x.astype(jnp.float32), axis=-1) * inv_t         # (1, C) f32
    h = jnp.dot(m, w1t_ref[...].astype(jnp.float32),
                preferred_element_type=jnp.float32)
    h = jnp.maximum(h + b1_ref[...].astype(jnp.float32), 0.0)   # (1, Cs)
    y = jnp.dot(h, w2t_ref[...].astype(jnp.float32),
                preferred_element_type=jnp.float32)
    g = jax.nn.sigmoid(y + b2_ref[...].astype(jnp.float32))     # (1, C) f32
    o_ref[...] = x * g.astype(x.dtype)[:, :, None]


def _pool_kernel(x_ref, sum_ref, *, t_total, tt, masked):
    """Accumulate per-channel sums over time. Grid = (B, T_tiles)."""
    t = pl.program_id(1)

    @pl.when(t == 0)
    def _():
        sum_ref[...] = jnp.zeros_like(sum_ref)

    x = x_ref[...].astype(jnp.float32)                          # (1, C, tt)
    if masked:  # static: only the cdiv-padded tail needs masking
        pos = jax.lax.broadcasted_iota(jnp.int32, x.shape, 2) + t * tt
        x = jnp.where(pos < t_total, x, 0.0)
    part = jnp.sum(x, axis=-1)                                  # (1, C)
    sum_ref[...] += part[:, None, :]                            # (1, 1, C)


def _rescale_gate_kernel(s_ref, w1t_ref, b1_ref, w2t_ref, b2_ref, x_ref,
                         o_ref, g_ref, *, inv_t):
    """Compute the gate once per batch (t == 0), then o = x * g per tile."""
    @pl.when(pl.program_id(1) == 0)
    def _():
        m = s_ref[0] * inv_t                                    # (1, C) f32
        h = jnp.dot(m, w1t_ref[...].astype(jnp.float32),
                    preferred_element_type=jnp.float32)
        h = jnp.maximum(h + b1_ref[...].astype(jnp.float32), 0.0)
        y = jnp.dot(h, w2t_ref[...].astype(jnp.float32),
                    preferred_element_type=jnp.float32)
        g_ref[...] = jax.nn.sigmoid(
            y + b2_ref[...].astype(jnp.float32)).astype(g_ref.dtype)

    x = x_ref[...]                                              # (1, C, tt)
    o_ref[...] = x * g_ref[...][:, :, None]                     # gate in x.dtype


# ---------------------------------------------------------------------------
# Wrapper
# ---------------------------------------------------------------------------
# Double-buffered (in + out) fused slab budget; must stay under the smallest
# default scoped-VMEM limit (16 MiB on v5e).
_FUSED_VMEM_BUDGET = 12 * 1024 * 1024
# Target streaming block size for the tiled two-pass path (~2 MiB hits ~85%+
# of the measured HBM roofline while 4x double-buffered blocks stay ~8 MiB).
_STREAM_BLOCK_BYTES = 2 * 1024 * 1024


def _choose_time_tile(C, T, itemsize, target_bytes=_STREAM_BLOCK_BYTES):
    """Lane-dense time tile: multiple of 128, block ~target_bytes, tt <= T."""
    if T <= 128:
        return T
    row = max(1, C * itemsize)
    tt = max(128, (target_bytes // row) // 128 * 128)
    tt = min(tt, (T // 128) * 128)
    return tt


def squeeze_excitation(x, w1, b1, w2, b2, *, allow_fused=True):
    """x: (B, C, T); w1: (C//s, C); b1: (C//s,); w2: (C, C//s); b2: (C,)."""
    B, C, T = x.shape
    Cs = w1.shape[0]
    itemsize = x.dtype.itemsize
    inv_t = 1.0 / T

    w1t = w1.T                 # (C, Cs)
    w2t = w2.T                 # (Cs, C)
    b1r = b1.reshape(1, Cs)
    b2r = b2.reshape(1, C)

    slab = C * T * itemsize    # one batch of x in VMEM

    # ---------------- Fused single-pass fast path (2*|x| HBM traffic). ------
    if allow_fused and 4 * slab <= _FUSED_VMEM_BUDGET:
        return pl.pallas_call(
            functools.partial(_fused_se_kernel, inv_t=inv_t),
            out_shape=jax.ShapeDtypeStruct((B, C, T), x.dtype),
            grid_spec=pltpu.PrefetchScalarGridSpec(
                num_scalar_prefetch=0,
                grid=(B,),
                in_specs=[
                    pl.BlockSpec((1, C, T), lambda b: (b, 0, 0)),
                    pl.BlockSpec((C, Cs), lambda b: (0, 0)),
                    pl.BlockSpec((1, Cs), lambda b: (0, 0)),
                    pl.BlockSpec((Cs, C), lambda b: (0, 0)),
                    pl.BlockSpec((1, C), lambda b: (0, 0)),
                ],
                out_specs=pl.BlockSpec((1, C, T), lambda b: (b, 0, 0)),
            ),
            compiler_params=pltpu.CompilerParams(
                dimension_semantics=("parallel",)),
        )(x, w1t, b1r, w2t, b2r)

    # ---------------- Two-pass path for large T. ----------------------------
    tt = _choose_time_tile(C, T, itemsize)
    n_t = pl.cdiv(T, tt)
    masked = (T % tt) != 0

    # Phase 1: per-channel sums over time (f32, lane-dense (B, 1, C)).
    sums = pl.pallas_call(
        functools.partial(_pool_kernel, t_total=T, tt=tt, masked=masked),
        out_shape=jax.ShapeDtypeStruct((B, 1, C), jnp.float32),
        grid_spec=pltpu.PrefetchScalarGridSpec(
            num_scalar_prefetch=0,
            grid=(B, n_t),
            in_specs=[pl.BlockSpec((1, C, tt), lambda b, t: (b, 0, t))],
            out_specs=pl.BlockSpec((1, 1, C), lambda b, t: (b, 0, 0)),
        ),
        compiler_params=pltpu.CompilerParams(
            dimension_semantics=("parallel", "arbitrary")),
    )(x)

    # Phase 2: gate (computed once per batch at t == 0) + streamed rescale.
    out = pl.pallas_call(
        functools.partial(_rescale_gate_kernel, inv_t=inv_t),
        out_shape=jax.ShapeDtypeStruct((B, C, T), x.dtype),
        grid_spec=pltpu.PrefetchScalarGridSpec(
            num_scalar_prefetch=0,
            grid=(B, n_t),
            in_specs=[
                pl.BlockSpec((1, 1, C), lambda b, t: (b, 0, 0)),
                pl.BlockSpec((C, Cs), lambda b, t: (0, 0)),
                pl.BlockSpec((1, Cs), lambda b, t: (0, 0)),
                pl.BlockSpec((Cs, C), lambda b, t: (0, 0)),
                pl.BlockSpec((1, C), lambda b, t: (0, 0)),
                pl.BlockSpec((1, C, tt), lambda b, t: (b, 0, t)),
            ],
            out_specs=pl.BlockSpec((1, C, tt), lambda b, t: (b, 0, t)),
            scratch_shapes=[pltpu.VMEM((1, C), x.dtype)],
        ),
        compiler_params=pltpu.CompilerParams(
            dimension_semantics=("parallel", "arbitrary")),
    )(sums, w1t, b1r, w2t, b2r, x)
    return out


# ---------------------------------------------------------------------------
# Helpers: init + plain-JAX reference of the PyTorch forward
# ---------------------------------------------------------------------------
def init_params(key, channels, s=2):
    cs = channels // s
    k1, k2, k3, k4 = jax.random.split(key, 4)
    bound1 = 1.0 / math.sqrt(channels)
    bound2 = 1.0 / math.sqrt(cs)
    w1 = jax.random.uniform(k1, (cs, channels), jnp.float32, -bound1, bound1)
    b1 = jax.random.uniform(k2, (cs,), jnp.float32, -bound1, bound1)
    w2 = jax.random.uniform(k3, (channels, cs), jnp.float32, -bound2, bound2)
    b2 = jax.random.uniform(k4, (channels,), jnp.float32, -bound2, bound2)
    return w1, b1, w2, b2


def reference(x, w1, b1, w2, b2):
    m = x.mean(axis=2)                           # (B, C)
    h = jax.nn.relu(m @ w1.T + b1)               # (B, C//s)
    g = jax.nn.sigmoid(h @ w2.T + b2)            # (B, C)
    return x * g[:, :, None]


if __name__ == "__main__":
    key = jax.random.PRNGKey(0)

    # 1) Small shape (fused single-pass path), NCT convention of the module.
    B, C, T, s = 2, 4, 16, 2
    kx, kp = jax.random.split(key)
    x = jax.random.normal(kx, (B, C, T), jnp.float32)
    params = init_params(kp, C, s)
    out = jax.block_until_ready(squeeze_excitation(x, *params))
    assert out.shape == (B, C, T)
    assert jnp.allclose(out, reference(x, *params), atol=1e-5, rtol=1e-5)

    # 2) Small shape forced down the tiled two-pass path; T=300 is not a
    #    multiple of 128, exercising the cdiv grid + masked tail tile.
    B2, C2, T2 = 2, 8, 300
    kx2, kp2 = jax.random.split(jax.random.PRNGKey(1))
    x2 = jax.random.normal(kx2, (B2, C2, T2), jnp.float32)
    p2 = init_params(kp2, C2, 2)
    out2 = jax.block_until_ready(
        squeeze_excitation(x2, *p2, allow_fused=False))
    assert jnp.allclose(out2, reference(x2, *p2), atol=1e-5, rtol=1e-5)

    # 3) Medium shape that naturally routes to the two-pass path via the
    #    fused-VMEM threshold (slab = 4 MiB > budget/4).
    B3, C3, T3 = 2, 256, 4096
    kx3, kp3 = jax.random.split(jax.random.PRNGKey(2))
    x3 = jax.random.normal(kx3, (B3, C3, T3), jnp.float32)
    p3 = init_params(kp3, C3, 2)
    out3 = jax.block_until_ready(squeeze_excitation(x3, *p3))
    assert jnp.allclose(out3, reference(x3, *p3), atol=1e-4, rtol=1e-4)

    print("KERNEL_OK")
</pallas_src>

<mosaic_0001>
module attributes {stable_mosaic.version = 11 : i64} {
  func.func @_fused_se_kernel(%arg0: i32, %arg1: memref<1x4x16xf32, #tpu.memory_space<vmem>>, %arg2: memref<4x2xf32, #tpu.memory_space<vmem>>, %arg3: memref<1x2xf32, #tpu.memory_space<vmem>>, %arg4: memref<2x4xf32, #tpu.memory_space<vmem>>, %arg5: memref<1x4xf32, #tpu.memory_space<vmem>>, %arg6: memref<1x4x16xf32, #tpu.memory_space<vmem>>) attributes {dimension_semantics = [#tpu.dimension_semantics<parallel>], iteration_bounds = array<i64: 2>, scalar_prefetch = 0 : i64, scratch_operands = 0 : i64, tpu.core_type = #tpu.core_type<tc>, window_params = [{transform_indices = @transform_0, window_bounds = array<i64: 1, 4, 16>}, {pipeline_mode = #tpu.pipeline_mode<synchronous>, transform_indices = @transform_1, window_bounds = array<i64: 4, 2>}, {pipeline_mode = #tpu.pipeline_mode<synchronous>, transform_indices = @transform_2, window_bounds = array<i64: 1, 2>}, {pipeline_mode = #tpu.pipeline_mode<synchronous>, transform_indices = @transform_3, window_bounds = array<i64: 2, 4>}, {pipeline_mode = #tpu.pipeline_mode<synchronous>, transform_indices = @transform_4, window_bounds = array<i64: 1, 4>}, {transform_indices = @transform_5, window_bounds = array<i64: 1, 4, 16>}]} {
    %c0 = arith.constant 0 : index
    %c0_0 = arith.constant 0 : index
    %c0_1 = arith.constant 0 : index
    %0 = vector.load %arg1[%c0, %c0_0, %c0_1] : memref<1x4x16xf32, #tpu.memory_space<vmem>>, vector<1x4x16xf32>
    %cst = arith.constant dense<0.000000e+00> : vector<1x4xf32>
    %1 = vector.multi_reduction <add>, %0, %cst [2] : vector<1x4x16xf32> to vector<1x4xf32>
    %cst_2 = arith.constant 6.250000e-02 : f32
    %2 = vector.broadcast %cst_2 : f32 to vector<1x4xf32>
    %3 = arith.mulf %1, %2 : vector<1x4xf32>
    %c0_3 = arith.constant 0 : index
    %c0_4 = arith.constant 0 : index
    %4 = vector.load %arg2[%c0_3, %c0_4] : memref<4x2xf32, #tpu.memory_space<vmem>>, vector<4x2xf32>
    %cst_5 = arith.constant dense<0.000000e+00> : vector<1x2xf32>
    %5 = tpu.matmul %3, %4, %cst_5 {dimension_numbers = #tpu.dot_dimension_numbers<[1], [0], [0], [1], [0, 0, 1, 1], [], []>} : vector<1x4xf32>, vector<4x2xf32>, vector<1x2xf32> -> vector<1x2xf32>
    %c0_6 = arith.constant 0 : index
    %c0_7 = arith.constant 0 : index
    %6 = vector.load %arg3[%c0_6, %c0_7] : memref<1x2xf32, #tpu.memory_space<vmem>>, vector<1x2xf32>
    %7 = arith.addf %5, %6 : vector<1x2xf32>
    %cst_8 = arith.constant 0.000000e+00 : f32
    %8 = vector.broadcast %cst_8 : f32 to vector<1x2xf32>
    %9 = arith.maximumf %7, %8 : vector<1x2xf32>
    %c0_9 = arith.constant 0 : index
    %c0_10 = arith.constant 0 : index
    %10 = vector.load %arg4[%c0_9, %c0_10] : memref<2x4xf32, #tpu.memory_space<vmem>>, vector<2x4xf32>
    %cst_11 = arith.constant dense<0.000000e+00> : vector<1x4xf32>
    %11 = tpu.matmul %9, %10, %cst_11 {dimension_numbers = #tpu.dot_dimension_numbers<[1], [0], [0], [1], [0, 0, 1, 1], [], []>} : vector<1x2xf32>, vector<2x4xf32>, vector<1x4xf32> -> vector<1x4xf32>
    %c0_12 = arith.constant 0 : index
    %c0_13 = arith.constant 0 : index
    %12 = vector.load %arg5[%c0_12, %c0_13] : memref<1x4xf32, #tpu.memory_space<vmem>>, vector<1x4xf32>
    %13 = arith.addf %11, %12 : vector<1x4xf32>
    %14 = arith.negf %13 : vector<1x4xf32>
    %15 = math.exp %14 : vector<1x4xf32>
    %cst_14 = arith.constant 1.000000e+00 : f32
    %16 = vector.broadcast %cst_14 : f32 to vector<1x4xf32>
    %17 = arith.addf %16, %15 : vector<1x4xf32>
    %18 = arith.divf %16, %17 : vector<1x4xf32>
    %19 = vector.shape_cast %18 : vector<1x4xf32> to vector<1x4x1xf32>
    %20 = vector.broadcast %19 : vector<1x4x1xf32> to vector<1x4x16xf32>
    %21 = arith.mulf %0, %20 : vector<1x4x16xf32>
    %c0_15 = arith.constant 0 : index
    %c0_16 = arith.constant 0 : index
    %c0_17 = arith.constant 0 : index
    %22 = vector.load %arg6[%c0_15, %c0_16, %c0_17] : memref<1x4x16xf32, #tpu.memory_space<vmem>>, vector<1x4x16xf32>
    tpu.vector_store %arg6[%c0_15, %c0_16, %c0_17], %21 {strides = array<i32>} : memref<1x4x16xf32, #tpu.memory_space<vmem>>, vector<1x4x16xf32>,
    return
  }
  func.func @transform_0(%arg0: i32) -> (i32, i32, i32) {
    %c0_i32 = arith.constant 0 : i32
    %c0_i32_0 = arith.constant 0 : i32
    %c0_i32_1 = arith.constant 0 : i32
    return %arg0, %c0_i32, %c0_i32_0 : i32, i32, i32
  }
  func.func @transform_1(%arg0: i32) -> (i32, i32) {
    %c0_i32 = arith.constant 0 : i32
    %c0_i32_0 = arith.constant 0 : i32
    %c0_i32_1 = arith.constant 0 : i32
    return %c0_i32, %c0_i32_0 : i32, i32
  }
  func.func @transform_2(%arg0: i32) -> (i32, i32) {
    %c0_i32 = arith.constant 0 : i32
    %c0_i32_0 = arith.constant 0 : i32
    %c0_i32_1 = arith.constant 0 : i32
    return %c0_i32, %c0_i32_0 : i32, i32
  }
  func.func @transform_3(%arg0: i32) -> (i32, i32) {
    %c0_i32 = arith.constant 0 : i32
    %c0_i32_0 = arith.constant 0 : i32
    %c0_i32_1 = arith.constant 0 : i32
    return %c0_i32, %c0_i32_0 : i32, i32
  }
  func.func @transform_4(%arg0: i32) -> (i32, i32) {
    %c0_i32 = arith.constant 0 : i32
    %c0_i32_0 = arith.constant 0 : i32
    %c0_i32_1 = arith.constant 0 : i32
    return %c0_i32, %c0_i32_0 : i32, i32
  }
  func.func @transform_5(%arg0: i32) -> (i32, i32, i32) {
    %c0_i32 = arith.constant 0 : i32
    %c0_i32_0 = arith.constant 0 : i32
    %c0_i32_1 = arith.constant 0 : i32
    return %arg0, %c0_i32, %c0_i32_0 : i32, i32, i32
  }
}

</mosaic_0001>

<llo_original>
// kernel: tpu_custom_call.1
$region0: #{tpu_custom_call.1}
  #allocation0 [shape = 'u32[]', space=smem, size = 0x4, offset = 0x4, fixed_abs, tag = 'smem constant byte address 0x4 - core index']
  #allocation1 [shape = 'u32[144,128]{1,0:T(1,128)}', space=vmem, size = 0x12000, scoped, tag = 'internal scratch']
  %s0 = inlined_call_operand.hbm [shape: f32[2,4,16], index: 0, kind: input, shape index: {}]
  %s1 = inlined_call_operand.vmem [shape: f32[4,2], index: 1, kind: input, shape index: {}]
  %s2 = inlined_call_operand.vmem [shape: f32[1,2], index: 2, kind: input, shape index: {}]
  %s3 = inlined_call_operand.vmem [shape: f32[2,4], index: 3, kind: input, shape index: {}]
  %s4 = inlined_call_operand.vmem [shape: f32[1,4], index: 4, kind: input, shape index: {}]
  %s5 = inlined_call_operand.hbm [shape: f32[2,4,16], index: 5, kind: output, shape index: {}]
  %s6 = sld [smem:[#allocation0]]
  $region57: #{tpu_custom_call.1} parent=0
    _
  %s8 = ssub.s32 1, %s6
  %s9 = scalar_select 0, %s8, %s6
  $region1: #{tpu_custom_call.1} parent=0
    #allocation2 [shape = 'u8[4096]{0}', space=vmem, size = 0x1000, scoped, tag = 'input window, operand 0']
    #allocation3 [shape = 's32[2]{0}', space=sflag, size = 0x8, scoped, tag = 'scoped memory for tpu_custom_call.1']
    #allocation4 [shape = 's32[2]{0}', space=sflag, size = 0x8, scoped, tag = 'scoped memory for tpu_custom_call.1']
    #allocation5 [shape = 'u8[4096]{0}', space=vmem, size = 0x1000, scoped, tag = 'output window, operand 0']
    %10 = vsyncpa [#allocation3], 0
    %s11 = scalar_lea.sflag [#allocation3], 1
    %12 = vsyncpa %s11, 0
    %13 = vsyncpa [#allocation4], 0
    %s14 = scalar_lea.sflag [#allocation4], 1
    %15 = vsyncpa %s14, 0
    loop: start=0, step=1, limit=4
    $region2: #{tpu_custom_call.1} parent=1 // loop_pre_header
      _
    $region3: #{tpu_custom_call.1} parent=1 // loop_header
      %s17 = sphi 0, %s21
      %p18 = scmp.ge.s32.totalorder %s17, 4
      %s27 = sphi 0, %s29
      %s30 = sphi 0, %s27
      %s31 = sphi 0, %s30
      %s47 = sphi 0, %s31
      %s51 = sphi 0, %s51
      %s53 = sphi 0, %s51
      %s54 = sphi 0, %s53
      %s68 = sphi 0, %s54
      %s72 = sphi 0, %s72
      %s74 = sphi 0, %s72
      %s75 = sphi 0, %s74
      %s89 = sphi 0, %s75
      %s93 = sphi 0, %s93
      %s95 = sphi 0, %s93
      %s96 = sphi 0, %s95
      %s110 = sphi 0, %s96
      %s114 = sphi 0, %s114
      %s116 = sphi 0, %s114
      %s117 = sphi 0, %s116
      %s131 = sphi 0, %s117
      %s137 = sphi 0, %s139
      %s140 = sphi 0, %s137
      %s141 = sphi 0, %s140
      %s157 = sphi 0, %s141
    $region4: #{tpu_custom_call.1} parent=1 // loop_header_branch
      %20 = sbr.rel (%p18) target = $region8
    $region5: #{tpu_custom_call.1} parent=1 // loop_body
      %s22 = ssub.s32 %s17, 1
      %s23 = ssub.s32 %s17, 2
      %s24 = sadd.s32 %s17, 1
      %s25 = ssub.s32 %s17, %s24
      %p26 = scmp.eq.s32.totalorder %s25, 0
      %s28 = sadd.s32 %s27, 1
      %s29 = scalar_select %p26, %s27, %s28
      %p32 = pneg %p26
      %p33 = scmp.eq.s32.totalorder %s17, 1
      %p34 = por %p32, %p33
      %p35 = scmp.ne.s32.totalorder %s27, %s30
      %p36 = scmp.eq.s32.totalorder %s17, 0
      %p37 = por %p35, %p36
      %p38 = scmp.ne.s32.totalorder %s27, %s30
      %p39 = scmp.eq.s32.totalorder %s22, 1
      %p40 = por %p38, %p39
      %p41 = scmp.ne.s32.totalorder %s30, %s31
      %p42 = scmp.eq.s32.totalorder %s22, 0
      %p43 = por %p41, %p42
      %p44 = scmp.ne.s32.totalorder %s30, %s31
      %p45 = scmp.eq.s32.totalorder %s23, 1
      %p46 = por %p44, %p45
      %p48 = scmp.ne.s32.totalorder %s31, %s47
      %p49 = scmp.eq.s32.totalorder %s23, 0
      %p50 = por %p48, %p49
      %s52 = sadd.s32 %s51, 1
      %p55 = scmp.eq.s32.totalorder %s17, 1
      %p56 = scmp.ne.s32.totalorder %s51, %s53
      %p57 = scmp.eq.s32.totalorder %s17, 0
      %p58 = por %p56, %p57
      %p59 = scmp.ne.s32.totalorder %s51, %s53
      %p60 = scmp.eq.s32.totalorder %s22, 1
      %p61 = por %p59, %p60
      %p62 = scmp.ne.s32.totalorder %s53, %s54
      %p63 = scmp.eq.s32.totalorder %s22, 0
      %p64 = por %p62, %p63
      %p65 = scmp.ne.s32.totalorder %s53, %s54
      %p66 = scmp.eq.s32.totalorder %s23, 1
      %p67 = por %p65, %p66
      %p69 = scmp.ne.s32.totalorder %s54, %s68
      %p70 = scmp.eq.s32.totalorder %s23, 0
      %p71 = por %p69, %p70
      %s73 = sadd.s32 %s72, 1
      %p76 = scmp.eq.s32.totalorder %s17, 1
      %p77 = scmp.ne.s32.totalorder %s72, %s74
      %p78 = scmp.eq.s32.totalorder %s17, 0
      %p79 = por %p77, %p78
      %p80 = scmp.ne.s32.totalorder %s72, %s74
      %p81 = scmp.eq.s32.totalorder %s22, 1
      %p82 = por %p80, %p81
      %p83 = scmp.ne.s32.totalorder %s74, %s75
      %p84 = scmp.eq.s32.totalorder %s22, 0
      %p85 = por %p83, %p84
      %p86 = scmp.ne.s32.totalorder %s74, %s75
      %p87 = scmp.eq.s32.totalorder %s23, 1
      %p88 = por %p86, %p87
      %p90 = scmp.ne.s32.totalorder %s75, %s89
      %p91 = scmp.eq.s32.totalorder %s23, 0
      %p92 = por %p90, %p91
      %s94 = sadd.s32 %s93, 1
      %p97 = scmp.eq.s32.totalorder %s17, 1
      %p98 = scmp.ne.s32.totalorder %s93, %s95
      %p99 = scmp.eq.s32.totalorder %s17, 0
      %p100 = por %p98, %p99
      %p101 = scmp.ne.s32.totalorder %s93, %s95
      %p102 = scmp.eq.s32.totalorder %s22, 1
      %p103 = por %p101, %p102
      %p104 = scmp.ne.s32.totalorder %s95, %s96
      %p105 = scmp.eq.s32.totalorder %s22, 0
      %p106 = por %p104, %p105
      %p107 = scmp.ne.s32.totalorder %s95, %s96
      %p108 = scmp.eq.s32.totalorder %s23, 1
      %p109 = por %p107, %p108
      %p111 = scmp.ne.s32.totalorder %s96, %s110
      %p112 = scmp.eq.s32.totalorder %s23, 0
      %p113 = por %p111, %p112
      %s115 = sadd.s32 %s114, 1
      %p118 = scmp.eq.s32.totalorder %s17, 1
      %p119 = scmp.ne.s32.totalorder %s114, %s116
      %p120 = scmp.eq.s32.totalorder %s17, 0
      %p121 = por %p119, %p120
      %p122 = scmp.ne.s32.totalorder %s114, %s116
      %p123 = scmp.eq.s32.totalorder %s22, 1
      %p124 = por %p122, %p123
      %p125 = scmp.ne.s32.totalorder %s116, %s117
      %p126 = scmp.eq.s32.totalorder %s22, 0
      %p127 = por %p125, %p126
      %p128 = scmp.ne.s32.totalorder %s116, %s117
      %p129 = scmp.eq.s32.totalorder %s23, 1
      %p130 = por %p128, %p129
      %p132 = scmp.ne.s32.totalorder %s117, %s131
      %p133 = scmp.eq.s32.totalorder %s23, 0
      %p134 = por %p132, %p133
      %s135 = ssub.s32 %s17, %s24
      %p136 = scmp.eq.s32.totalorder %s135, 0
      %s138 = sadd.s32 %s137, 1
      %s139 = scalar_select %p136, %s137, %s138
      %p142 = pneg %p136
      %p143 = scmp.eq.s32.totalorder %s17, 1
      %p144 = por %p142, %p143
      %p145 = scmp.ne.s32.totalorder %s137, %s140
      %p146 = scmp.eq.s32.totalorder %s17, 0
      %p147 = por %p145, %p146
      %p148 = scmp.ne.s32.totalorder %s137, %s140
      %p149 = scmp.eq.s32.totalorder %s22, 1
      %p150 = por %p148, %p149
      %p151 = scmp.ne.s32.totalorder %s140, %s141
      %p152 = scmp.eq.s32.totalorder %s22, 0
      %p153 = por %p151, %p152
      %p154 = scmp.ne.s32.totalorder %s140, %s141
      %p155 = scmp.eq.s32.totalorder %s23, 1
      %p156 = por %p154, %p155
      %p158 = scmp.ne.s32.totalorder %s141, %s157
      %p159 = scmp.eq.s32.totalorder %s23, 0
      %p160 = por %p158, %p159
      %p161 = scmp.le.s32.totalorder 1, %s17
      %p162 = scmp.lt.s32.totalorder %s17, 3
      %p163 = pnand %p161, %p162
      %p164 = pneg %p163
      // Predicated region
      $region9: #{tpu_custom_call.1} parent=5 // pred_check
        _
      $region10: #{tpu_custom_call.1} parent=5 // pred_check_branch
        %166 = sbr.rel (%p163) target = $region12
      $region11: #{tpu_custom_call.1} parent=5 // pred_region
        %s167 = ssub.s32 %s17, 1
        // Predicated region
        $region13: #{tpu_custom_call.1} parent=11 // pred_check
          %p168 = pneg %p64
        $region14: #{tpu_custom_call.1} parent=11 // pred_check_branch
          %170 = sbr.rel (%p168) target = $region16
        $region15: #{tpu_custom_call.1} parent=11 // pred_region
          _
        $region16: #{tpu_custom_call.1} parent=11 // pred_fallthru
          _
        // Predicated region
        $region17: #{tpu_custom_call.1} parent=11 // pred_check
          %p171 = pneg %p85
        $region18: #{tpu_custom_call.1} parent=11 // pred_check_branch
          %173 = sbr.rel (%p171) target = $region20
        $region19: #{tpu_custom_call.1} parent=11 // pred_region
          _
        $region20: #{tpu_custom_call.1} parent=11 // pred_fallthru
          _
        // Predicated region
        $region21: #{tpu_custom_call.1} parent=11 // pred_check
          %p174 = pneg %p106
        $region22: #{tpu_custom_call.1} parent=11 // pred_check_branch
          %176 = sbr.rel (%p174) target = $region24
        $region23: #{tpu_custom_call.1} parent=11 // pred_region
          _
        $region24: #{tpu_custom_call.1} parent=11 // pred_fallthru
          _
        // Predicated region
        $region25: #{tpu_custom_call.1} parent=11 // pred_check
          %p177 = pneg %p127
        $region26: #{tpu_custom_call.1} parent=11 // pred_check_branch
          %179 = sbr.rel (%p177) target = $region28
        $region27: #{tpu_custom_call.1} parent=11 // pred_region
          _
        $region28: #{tpu_custom_call.1} parent=11 // pred_fallthru
          _
      $region12: #{tpu_custom_call.1} parent=5 // pred_fallthru
        _
      %p180 = scmp.lt.s32.totalorder %s17, 2
      // Predicated region
      $region29: #{tpu_custom_call.1} parent=5 // pred_check
        %p181 = pneg %p180
      $region30: #{tpu_custom_call.1} parent=5 // pred_check_branch
        %183 = sbr.rel (%p181) target = $region32
      $region31: #{tpu_custom_call.1} parent=5 // pred_region
        // Predicated region
        $region33: #{tpu_custom_call.1} parent=31 // pred_check
          %p184 = pneg %p37
        $region34: #{tpu_custom_call.1} parent=31 // pred_check_branch
          %186 = sbr.rel (%p184) target = $region36
        $region35: #{tpu_custom_call.1} parent=31 // pred_region
          %s187 = sand.u32 %s27, 1
          %s188 = scalar_lea.sflag [#allocation3], %s187
          %s189 = sand.u32 %s27, 1
          %s190 = smul.addr %s189, 4
          %s191 = scalar_lea.vmem [#allocation2], %s190
          %s193 = ssub.s32 64, 64
          %194 = vsyncadd %s188, %s193
          %s195 = smul.addr %s17, 64
          %s196 = scalar_lea.hbm %s0, %s195
          %s198 = sshll.u32 %s191, 4
          %s199 = int_to_ptr.vmem [resolvable:$true] %s198
          %201 = dma.hbm_to_vmem [thread:$0]  %s196, 64, %s199, %s188
        $region36: #{tpu_custom_call.1} parent=31 // pred_fallthru
          _
      $region32: #{tpu_custom_call.1} parent=5 // pred_fallthru
        _
      %p202 = scmp.le.s32.totalorder 1, %s17
      %p203 = scmp.lt.s32.totalorder %s17, 3
      %p204 = pnand %p202, %p203
      %p205 = pneg %p204
      // Predicated region
      $region37: #{tpu_custom_call.1} parent=5 // pred_check
        _
      $region38: #{tpu_custom_call.1} parent=5 // pred_check_branch
        %207 = sbr.rel (%p204) target = $region40
      $region39: #{tpu_custom_call.1} parent=5 // pred_region
        %s208 = ssub.s32 %s17, 1
        %s209 = sand.u32 %s30, 1
        %s210 = scalar_lea.sflag [#allocation3], %s209
        %s211 = sand.u32 %s30, 1
        %s212 = smul.addr %s211, 4
        %s213 = scalar_lea.vmem [#allocation2], %s212
        // Predicated region
        $region41: #{tpu_custom_call.1} parent=39 // pred_check
          %p214 = pneg %p43
        $region42: #{tpu_custom_call.1} parent=39 // pred_check_branch
          %216 = sbr.rel (%p214) target = $region44
        $region43: #{tpu_custom_call.1} parent=39 // pred_region
          %217 = dma.done %s210, 64
        $region44: #{tpu_custom_call.1} parent=39 // pred_fallthru
          _
        %s218 = sand.u32 %s30, 1
        %s219 = scalar_lea.sflag [#allocation3], %s218
        %s220 = sand.u32 %s30, 1
        %s221 = smul.addr %s220, 4
        %s222 = scalar_lea.vmem [#allocation2], %s221
        %p223 = pneg %p43
        %p224 = pneg %p40
        %p225 = pneg %p64
        %p226 = pneg %p61
        %p227 = pneg %p85
        %p228 = pneg %p82
        %p229 = pneg %p106
        %p230 = pneg %p103
        %p231 = pneg %p127
        %p232 = pneg %p124
        %p233 = pneg %p153
        %p234 = pneg %p150
        %s235 = sand.u32 %s140, 1
        %s236 = scalar_lea.sflag [#allocation4], %s235
        %s237 = sand.u32 %s140, 1
        %s238 = smul.addr %s237, 4
        %s239 = scalar_lea.vmem [#allocation5], %s238
        %v240 = vld [vmem:[%s213] sm:$0xf]
        %vm241 = vcmask 125952
        %v242 = vsel %vm241, %v240, 0.0
        %243 = vadd.xlane.f32.xlu0 %v242
        %v244 = vpop.xlane.xlu0 %243
        %v245 = vmul.f32 %v244, 0.0625
        %v246 = vld [vmem:[%s1] sm:$0xf]
        %v247 = vld [vmem:[%s2] sm:$0x1]
        %v249 = vlaneseq
        %v250 = vand.u32 %v249, 127
        %v251 = vlaneseq
        %v252 = vshrl.u32 %v251, 7
        %v253 = vsub.s32 %v250, %v252
        %v254 = vrot.slane %v245, %v253
        %vm255 = vcmask 31744
        %v256 = vsel %vm255, %v254, 0
        %vm258 = vcmask 1043456
        %v260 = vsel %vm258, %v246, 0
        %262 = vmatprep.subr.mxu0 0.0
        %263 = vmatpush1.msra.mxu0 %v260
        %264 = vmatprep.subr.mxu0 0.0
        %265 = vmatpush1.msra.mxu0 0.0
        %266 = vmatprep.subr.mxu0 0.0
        %267 = vmatpush1.msra.mxu0 0.0
        %268 = vmatprep.subr.mxu0 0.0
        %269 = vmatpush1.msra.mxu0 0.0
        %270 = vmatprep.subr.mxu0 0.0
        %271 = vmatpush1.msra.mxu0 0.0
        %272 = vmatprep.subr.mxu0 0.0
        %273 = vmatpush1.msra.mxu0 0.0
        %274 = vmatprep.subr.mxu0 0.0
        %275 = vmatpush1.msra.mxu0 0.0
        %276 = vmatprep.subr.mxu0 0.0
        %277 = vmatpush1.msra.mxu0 0.0
        %278 = vmatprep.subr.mxu0 0.0
        %279 = vmatpush1.msra.mxu0 0.0
        %280 = vmatprep.subr.mxu0 0.0
        %281 = vmatpush1.msra.mxu0 0.0
        %282 = vmatprep.subr.mxu0 0.0
        %283 = vmatpush1.msra.mxu0 0.0
        %284 = vmatprep.subr.mxu0 0.0
        %285 = vmatpush1.msra.mxu0 0.0
        %286 = vmatprep.subr.mxu0 0.0
        %287 = vmatpush1.msra.mxu0 0.0
        %288 = vmatprep.subr.mxu0 0.0
        %289 = vmatpush1.msra.mxu0 0.0
        %290 = vmatprep.subr.mxu0 0.0
        %291 = vmatpush1.msra.mxu0 0.0
        %292 = vmatprep.subr.mxu0 0.0
        %293 = vmatpush1.msra.mxu0 0.0
        %294 = vmatprep.subr.mxu0 0.0
        %295 = vmatpush1.msra.mxu0 0.0
        %296 = vmatprep.subr.mxu0 0.0
        %297 = vmatpush1.msra.mxu0 0.0
        %298 = vmatprep.subr.mxu0 0.0
        %299 = vmatpush1.msra.mxu0 0.0
        %300 = vmatprep.subr.mxu0 0.0
        %301 = vmatpush1.msra.mxu0 0.0
        %302 = vmatprep.subr.mxu0 0.0
        %303 = vmatpush1.msra.mxu0 0.0
        %304 = vmatprep.subr.mxu0 0.0
        %305 = vmatpush1.msra.mxu0 0.0
        %306 = vmatprep.subr.mxu0 0.0
        %307 = vmatpush1.msra.mxu0 0.0
        %308 = vmatprep.subr.mxu0 0.0
        %309 = vmatpush1.msra.mxu0 0.0
        %310 = vmatprep.subr.mxu0 0.0
        %311 = vmatpush1.msra.mxu0 0.0
        %312 = vmatprep.subr.mxu0 0.0
        %313 = vmatpush1.msra.mxu0 0.0
        %314 = vmatprep.subr.mxu0 0.0
        %315 = vmatpush1.msra.mxu0 0.0
        %316 = vmatprep.subr.mxu0 0.0
        %317 = vmatpush1.msra.mxu0 0.0
        %318 = vmatprep.subr.mxu0 0.0
        %319 = vmatpush1.msra.mxu0 0.0
        %320 = vmatprep.subr.mxu0 0.0
        %321 = vmatpush1.msra.mxu0 0.0
        %322 = vmatprep.subr.mxu0 0.0
        %323 = vmatpush1.msra.mxu0 0.0
        %324 = vmatprep.subr.mxu0 0.0
        %325 = vmatpush1.msra.mxu0 0.0
        %326 = vmatprep.mubr.f32.mxu0 0.0
        %327 = vmatmul.mubr.f32.gmra.mrb[0].mxu0 %v256
        %v328 = vpop.f32.mrb[0].mxu0
        %v329 = vadd.f32 %v247, %v328
        %v330 = vpop.f32.mrb[0].mxu0
        %331 = vdwg.mxu0
        %v332 = vmax.f32 %v329, 0.0
        %v333 = vld [vmem:[%s3] sm:$0x3]
        %v334 = vld [vmem:[%s4] sm:$0x1]
        %vm335 = vcmask 15360
        %v337 = vsel %vm335, %v332, 0
        %vm339 = vcmask 1041408
        %v341 = vsel %vm339, %v333, 0
        %343 = vmatprep.subr.mxu0 0.0
        %344 = vmatpush1.msra.mxu0 %v341
        %345 = vmatprep.subr.mxu0 0.0
        %346 = vmatpush1.msra.mxu0 0.0
        %347 = vmatprep.subr.mxu0 0.0
        %348 = vmatpush1.msra.mxu0 0.0
        %349 = vmatprep.subr.mxu0 0.0
        %350 = vmatpush1.msra.mxu0 0.0
        %351 = vmatprep.subr.mxu0 0.0
        %352 = vmatpush1.msra.mxu0 0.0
        %353 = vmatprep.subr.mxu0 0.0
        %354 = vmatpush1.msra.mxu0 0.0
        %355 = vmatprep.subr.mxu0 0.0
        %356 = vmatpush1.msra.mxu0 0.0
        %357 = vmatprep.subr.mxu0 0.0
        %358 = vmatpush1.msra.mxu0 0.0
        %359 = vmatprep.subr.mxu0 0.0
        %360 = vmatpush1.msra.mxu0 0.0
        %361 = vmatprep.subr.mxu0 0.0
        %362 = vmatpush1.msra.mxu0 0.0
        %363 = vmatprep.subr.mxu0 0.0
        %364 = vmatpush1.msra.mxu0 0.0
        %365 = vmatprep.subr.mxu0 0.0
        %366 = vmatpush1.msra.mxu0 0.0
        %367 = vmatprep.subr.mxu0 0.0
        %368 = vmatpush1.msra.mxu0 0.0
        %369 = vmatprep.subr.mxu0 0.0
        %370 = vmatpush1.msra.mxu0 0.0
        %371 = vmatprep.subr.mxu0 0.0
        %372 = vmatpush1.msra.mxu0 0.0
        %373 = vmatprep.subr.mxu0 0.0
        %374 = vmatpush1.msra.mxu0 0.0
        %375 = vmatprep.subr.mxu0 0.0
        %376 = vmatpush1.msra.mxu0 0.0
        %377 = vmatprep.subr.mxu0 0.0
        %378 = vmatpush1.msra.mxu0 0.0
        %379 = vmatprep.subr.mxu0 0.0
        %380 = vmatpush1.msra.mxu0 0.0
        %381 = vmatprep.subr.mxu0 0.0
        %382 = vmatpush1.msra.mxu0 0.0
        %383 = vmatprep.subr.mxu0 0.0
        %384 = vmatpush1.msra.mxu0 0.0
        %385 = vmatprep.subr.mxu0 0.0
        %386 = vmatpush1.msra.mxu0 0.0
        %387 = vmatprep.subr.mxu0 0.0
        %388 = vmatpush1.msra.mxu0 0.0
        %389 = vmatprep.subr.mxu0 0.0
        %390 = vmatpush1.msra.mxu0 0.0
        %391 = vmatprep.subr.mxu0 0.0
        %392 = vmatpush1.msra.mxu0 0.0
        %393 = vmatprep.subr.mxu0 0.0
        %394 = vmatpush1.msra.mxu0 0.0
        %395 = vmatprep.subr.mxu0 0.0
        %396 = vmatpush1.msra.mxu0 0.0
        %397 = vmatprep.subr.mxu0 0.0
        %398 = vmatpush1.msra.mxu0 0.0
        %399 = vmatprep.subr.mxu0 0.0
        %400 = vmatpush1.msra.mxu0 0.0
        %401 = vmatprep.subr.mxu0 0.0
        %402 = vmatpush1.msra.mxu0 0.0
        %403 = vmatprep.subr.mxu0 0.0
        %404 = vmatpush1.msra.mxu0 0.0
        %405 = vmatprep.subr.mxu0 0.0
        %406 = vmatpush1.msra.mxu0 0.0
        %407 = vmatprep.mubr.f32.mxu0 0.0
        %408 = vmatmul.mubr.f32.gmra.mrb[0].mxu0 %v337
        %v409 = vpop.f32.mrb[0].mxu0
        %v410 = vadd.f32 %v334, %v409
        %v411 = vpop.f32.mrb[0].mxu0
        %412 = vdwg.mxu0
        %v413 = vxor.u32 %v410, 2147483648
        %v414 = vmul.f32 %v413, 1.442695
        %v415 = vpow.pop %v414
        %v416 = vadd.f32 %v415, 1.0
        %v417 = vrcp.pop %v416
        %v418 = vmul.f32 1.0, %v417
        %v419 = vlaneseq
        %v420 = vshrl.u32 %v419, 7
        %v421 = vsub.s32 0, %v420
        %v422 = vrot.slane %v418, %v421
        %424 = vbcast.lane.b32.xlu0 %v422, 256
        %v425 = vpop.permute.xlu0 %424
        %v426 = vmul.f32 %v240, %v425
        %427 = vst.msk [vmem:[%s239] sm:$0xf] %vm241, %v426
        %s428 = sand.u32 %s140, 1
        %s429 = scalar_lea.sflag [#allocation4], %s428
        %s430 = sand.u32 %s140, 1
        %s431 = smul.addr %s430, 4
        %s432 = scalar_lea.vmem [#allocation5], %s431
        // Predicated region
        $region45: #{tpu_custom_call.1} parent=39 // pred_check
          %p433 = pneg %p150
        $region46: #{tpu_custom_call.1} parent=39 // pred_check_branch
          %435 = sbr.rel (%p433) target = $region48
        $region47: #{tpu_custom_call.1} parent=39 // pred_region
          %s437 = ssub.s32 64, 64
          %438 = vsyncadd %s429, %s437
          %s439 = smul.addr %s22, 64
          %s440 = scalar_lea.hbm %s5, %s439
          %s442 = sshll.u32 %s432, 4
          %s443 = int_to_ptr.vmem [resolvable:$true] %s442
          %445 = dma.vmem_to_hbm [thread:$0]  %s443, 64, %s440, %s429
        $region48: #{tpu_custom_call.1} parent=39 // pred_fallthru
          _
      $region40: #{tpu_custom_call.1} parent=5 // pred_fallthru
        _
      %p446 = scmp.le.s32.totalorder 2, %s17
      // Predicated region
      $region49: #{tpu_custom_call.1} parent=5 // pred_check
        %p447 = pneg %p446
      $region50: #{tpu_custom_call.1} parent=5 // pred_check_branch
        %449 = sbr.rel (%p447) target = $region52
      $region51: #{tpu_custom_call.1} parent=5 // pred_region
        %s450 = ssub.s32 %s17, 2
        // Predicated region
        $region53: #{tpu_custom_call.1} parent=51 // pred_check
          %p451 = pneg %p156
        $region54: #{tpu_custom_call.1} parent=51 // pred_check_branch
          %453 = sbr.rel (%p451) target = $region56
        $region55: #{tpu_custom_call.1} parent=51 // pred_region
          %s454 = sand.u32 %s141, 1
          %s455 = scalar_lea.sflag [#allocation4], %s454
          %s456 = sand.u32 %s141, 1
          %s457 = smul.addr %s456, 4
          %s458 = scalar_lea.vmem [#allocation5], %s457
          %459 = dma.done %s455, 64
        $region56: #{tpu_custom_call.1} parent=51 // pred_fallthru
          _
      $region52: #{tpu_custom_call.1} parent=5 // pred_fallthru
        _
    $region6: #{tpu_custom_call.1} parent=1 // loop_footer
      %s21 = sadd.s32 1, %s17
    $region7: #{tpu_custom_call.1} parent=1 // loop_footer_branch
      %16 = sbr.rel target = $region3
    $region8: #{tpu_custom_call.1} parent=1 // loop_exit
      _
    %460 = vsyncpa [#allocation3], 1
    %s461 = scalar_lea.sflag [#allocation3], 1
    %462 = vsyncpa %s461, 1
    %463 = vsyncpa [#allocation4], 1
    %s464 = scalar_lea.sflag [#allocation4], 1
    %465 = vsyncpa %s464, 1

</llo_original>
